<compile_context>
chip_gen: v5e
topology: v5e:2x2
jax: 0.10.0
libtpu: 0.0.40
codegen_flags: <defaults>
</compile_context>

<pallas_src>
import functools
import math

import jax
import jax.numpy as jnp
from jax.experimental import pallas as pl
from jax.experimental.pallas import tpu as pltpu

LANE = 128  # TPU lane width; channel dims are padded to multiples of this.


def _round_up(x, m):
    return ((x + m - 1) // m) * m


def _sage_conv_kernel(apply_relu, pre_apply_wl, d_in,
                      nz_ref, a_ref, y_ref, xb_ref, w_ref, b_ref,
                      out_ref, acc_ref):
    """One SAGEConv layer, one (node-tile i, contraction-tile k) grid step.

    nz_ref : (n_tiles_i, n_tiles_k) int32 SMEM  nonzero-block indicator
    a_ref  : (TILE_N, TILE_K)        adjacency block (row-normalized)
    y_ref  : (TILE_K, D_agg)         aggregation operand block
                                     (features, or features @ W_l^T if
                                      pre_apply_wl)
    xb_ref : (TILE_N, D_in)          this tile's own features (root term)
    w_ref  : (2*D_in, D_out) fused [W_l^T; W_r^T]   (standard path)
             (D_in,   D_out) W_r^T                   (pre_apply_wl path)
    b_ref  : (1, D_out) f32          lin_l bias
    out_ref: (TILE_N, D_out)
    acc_ref: (TILE_N, 2*D_in) or (TILE_N, D_out) f32 accumulator scratch
    """
    i = pl.program_id(0)
    k = pl.program_id(1)
    k_last = pl.num_programs(1) - 1

    @pl.when(k == 0)
    def _init():
        acc_ref[...] = jnp.zeros_like(acc_ref)

    # Block-sparse skip: an all-zero adjacency block contributes nothing.
    @pl.when(nz_ref[i, k] != 0)
    def _accumulate():
        part = jnp.dot(a_ref[...], y_ref[...],
                       preferred_element_type=jnp.float32)
        if pre_apply_wl:
            acc_ref[...] += part
        else:
            acc_ref[:, :d_in] += part

    @pl.when(k == k_last)
    def _finalize():
        if pre_apply_wl:
            # acc already holds (A @ (h @ W_l^T)); add the root linear.
            out = acc_ref[...] + jnp.dot(xb_ref[...], w_ref[...],
                                         preferred_element_type=jnp.float32)
        else:
            # Fused linear: lhs = [agg | x], one MXU matmul with K = 2*D_in.
            acc_ref[:, d_in:] = xb_ref[...].astype(jnp.float32)
            out = jnp.dot(acc_ref[...].astype(w_ref.dtype), w_ref[...],
                          preferred_element_type=jnp.float32)
        out = out + b_ref[...]           # bias-add / ReLU stay f32 on the VPU
        if apply_relu:
            out = jnp.maximum(out, 0.0)
        out_ref[...] = out.astype(out_ref.dtype)


def _sage_conv_pallas(a_mxu, nz_blocks, y, xb, w, b2, *,
                      apply_relu, pre_apply_wl, tile_n, tile_k, out_dtype):
    """One SAGEConv layer as a single pallas_call with a K-tiled aggregation."""
    n_p = a_mxu.shape[0]
    d_in_p = xb.shape[1]
    d_agg = y.shape[1]
    w_rows, d_out_p = w.shape
    acc_cols = d_out_p if pre_apply_wl else 2 * d_in_p

    assert n_p % tile_n == 0 and n_p % tile_k == 0
    assert tile_n % 8 == 0 and tile_k % LANE == 0
    grid = (n_p // tile_n, n_p // tile_k)

    # Scoped-VMEM limit sized from the real buffer sum (everything double
    # buffered) + accumulator scratch, with 2x headroom.
    mxu_bytes = jnp.dtype(a_mxu.dtype).itemsize
    out_bytes = jnp.dtype(out_dtype).itemsize
    buf = 2 * (tile_n * tile_k * mxu_bytes        # adjacency block
               + tile_k * d_agg * mxu_bytes       # aggregation operand block
               + tile_n * d_in_p * mxu_bytes      # root features block
               + w_rows * d_out_p * mxu_bytes     # fused weights (resident)
               + d_out_p * 4                      # bias
               + tile_n * d_out_p * out_bytes)    # output block
    buf += tile_n * acc_cols * 4                  # accumulator scratch
    vmem_limit = int(min(max(2 * buf + (2 << 20), 8 << 20), 64 << 20))

    kernel = functools.partial(_sage_conv_kernel, apply_relu, pre_apply_wl,
                               d_in_p)

    return pl.pallas_call(
        kernel,
        out_shape=jax.ShapeDtypeStruct((n_p, d_out_p), out_dtype),
        grid_spec=pltpu.PrefetchScalarGridSpec(
            num_scalar_prefetch=1,
            grid=grid,
            in_specs=[
                # adjacency block (i, k)
                pl.BlockSpec((tile_n, tile_k), lambda i, k, nz: (i, k)),
                # aggregation operand block (k, 0)
                pl.BlockSpec((tile_k, d_agg), lambda i, k, nz: (k, 0)),
                # root-term feature block (i, 0) - constant in k, fetched once
                pl.BlockSpec((tile_n, d_in_p), lambda i, k, nz: (i, 0)),
                # fused / root weights (resident)
                pl.BlockSpec((w_rows, d_out_p), lambda i, k, nz: (0, 0)),
                # bias (resident)
                pl.BlockSpec((1, d_out_p), lambda i, k, nz: (0, 0)),
            ],
            out_specs=pl.BlockSpec((tile_n, d_out_p), lambda i, k, nz: (i, 0)),
            scratch_shapes=[pltpu.VMEM((tile_n, acc_cols), jnp.float32)],
        ),
        compiler_params=pltpu.CompilerParams(
            # node tiles shard across TensorCores (v7x), reduction axis last.
            dimension_semantics=("parallel", "arbitrary"),
            vmem_limit_bytes=vmem_limit),
    )(nz_blocks, a_mxu, y, xb, w, b2)


def sage_forward(x, a_norm, params, *, tile_n=128, tile_k=128,
                 mxu_dtype=jnp.bfloat16):
    """Full SAGE forward.  params: list of (W_l, W_r, b) per SAGEConv layer."""
    n, d_in0 = x.shape
    n_p = _round_up(n, math.lcm(tile_n, tile_k))

    # Zero-pad nodes: padded rows/cols of the adjacency are zero, so real
    # rows never aggregate from padded nodes; padded output rows are sliced
    # off at the end.
    a_p = jnp.pad(a_norm, ((0, n_p - n), (0, n_p - n)))
    a_mxu = a_p.astype(mxu_dtype)

    # Per-(row-tile, col-tile) nonzero indicator, scalar-prefetched into SMEM.
    nz_blocks = jnp.any(
        a_p.reshape(n_p // tile_n, tile_n, n_p // tile_k, tile_k) != 0,
        axis=(1, 3)).astype(jnp.int32)

    d0_p = _round_up(d_in0, LANE)
    h = jnp.pad(x, ((0, n_p - n), (0, d0_p - d_in0))).astype(mxu_dtype)

    num_layers = len(params)
    for li, (w_l, w_r, b) in enumerate(params):
        d_out, d_in = w_l.shape
        d_in_p = _round_up(d_in, LANE)
        d_out_p = _round_up(d_out, LANE)
        assert h.shape[1] == d_in_p
        is_last = li == num_layers - 1

        # Lane-dense padding of the layer parameters (zeros, exact).
        wl_p = jnp.pad(w_l, ((0, d_out_p - d_out), (0, d_in_p - d_in)))
        wr_p = jnp.pad(w_r, ((0, d_out_p - d_out), (0, d_in_p - d_in)))
        b2 = jnp.pad(b, (0, d_out_p - d_out)).reshape(1, d_out_p)
        b2 = b2.astype(jnp.float32)

        pre_apply_wl = d_out_p < d_in_p
        if pre_apply_wl:
            # Reassociate (A @ h) @ W_l^T == A @ (h @ W_l^T): the O(N*d) matmul
            # runs in XLA, the O(N^2)-scaled aggregation contracts over d_out.
            y = (h.astype(jnp.float32) @ wl_p.T).astype(mxu_dtype)
            w_k = wr_p.T.astype(mxu_dtype)                       # (d_in, d_out)
        else:
            y = h
            # Fused [W_l^T ; W_r^T] -> single MXU matmul in the kernel.
            w_k = jnp.concatenate([wl_p.T, wr_p.T], axis=0).astype(mxu_dtype)

        out_dtype = jnp.float32 if is_last else mxu_dtype
        h = _sage_conv_pallas(a_mxu, nz_blocks, y, h, w_k, b2,
                              apply_relu=not is_last,
                              pre_apply_wl=pre_apply_wl,
                              tile_n=tile_n, tile_k=tile_k,
                              out_dtype=out_dtype)

    d_out_final = params[-1][0].shape[0]
    return h[:n, :d_out_final]


def _reference_forward(x, a_norm, params):
    """Pure-JAX f32 reference matching the PyTorch module's eval forward."""
    h = x
    num_layers = len(params)
    for li, (w_l, w_r, b) in enumerate(params):
        h_new = (a_norm @ h) @ w_l.T + h @ w_r.T + b
        if li < num_layers - 1:
            h_new = jnp.maximum(h_new, 0.0)
        h = h_new
    return h


def _init_params(key, in_ch, hid, out_ch, num_layers):
    """Deterministic init (uniform +/- 1/sqrt(fan_in)) for each SAGEConv."""
    dims = [(in_ch, hid)] + [(hid, hid)] * (num_layers - 2) + [(hid, out_ch)]
    params = []
    for d_in, d_out in dims:
        key, k1, k2, k3 = jax.random.split(key, 4)
        bound = 1.0 / (d_in ** 0.5)
        w_l = jax.random.uniform(k1, (d_out, d_in), jnp.float32, -bound, bound)
        w_r = jax.random.uniform(k2, (d_out, d_in), jnp.float32, -bound, bound)
        b = jax.random.uniform(k3, (d_out,), jnp.float32, -bound, bound)
        params.append((w_l, w_r, b))
    return params


if __name__ == "__main__":
    # Small graph; N deliberately not a multiple of 128 to exercise padding,
    # two disconnected communities so some 128x128 adjacency blocks are empty
    # (exercises the block-sparse skip path).
    N_NODES = 320
    IN_CH, HID, OUT_CH = 64, 256, 8
    NUM_LAYERS = 3

    key = jax.random.PRNGKey(0)
    key, xk, ak = jax.random.split(key, 3)

    x = jax.random.normal(xk, (N_NODES, IN_CH), jnp.float32)

    comm = jnp.arange(N_NODES) // (N_NODES // 2)
    same = (comm[:, None] == comm[None, :]).astype(jnp.float32)
    adj = (jax.random.uniform(ak, (N_NODES, N_NODES)) < 0.1).astype(jnp.float32)
    adj = adj * same
    deg = jnp.maximum(jnp.sum(adj, axis=1, keepdims=True), 1.0)
    a_norm = adj / deg       # row-normalized => adj @ x is the neighbor mean

    params = _init_params(key, IN_CH, HID, OUT_CH, NUM_LAYERS)
    ref = _reference_forward(x, a_norm, params)

    # f32 MXU path: checks structure / padding / block-skip logic.
    out_f32 = jax.block_until_ready(
        sage_forward(x, a_norm, params, mxu_dtype=jnp.float32))
    assert out_f32.shape == (N_NODES, OUT_CH)
    assert jnp.allclose(out_f32, ref, atol=1e-2, rtol=1e-2), (
        float(jnp.max(jnp.abs(out_f32 - ref))))

    # bf16 MXU path (the recommended perf config on v6e/v7x), looser tolerance
    # since matmul inputs are rounded to bf16 (accumulation stays f32).
    out_bf16 = jax.block_until_ready(
        sage_forward(x, a_norm, params, mxu_dtype=jnp.bfloat16))
    assert out_bf16.shape == (N_NODES, OUT_CH)
    assert jnp.allclose(out_bf16, ref, atol=5e-2, rtol=5e-2), (
        float(jnp.max(jnp.abs(out_bf16 - ref))))

    print("KERNEL_OK")
</pallas_src>

<mosaic_0001>
module attributes {stable_mosaic.version = 11 : i64} {
  func.func @_sage_conv_kernel(%arg0: i32, %arg1: i32, %arg2: memref<3x3xi32, #tpu.memory_space<smem>>, %arg3: memref<128x128xf32, #tpu.memory_space<vmem>>, %arg4: memref<128x128xf32, #tpu.memory_space<vmem>>, %arg5: memref<128x128xf32, #tpu.memory_space<vmem>>, %arg6: memref<256x256xf32, #tpu.memory_space<vmem>>, %arg7: memref<1x256xf32, #tpu.memory_space<vmem>>, %arg8: memref<128x256xf32, #tpu.memory_space<vmem>>, %arg9: memref<128x256xf32, #tpu.memory_space<vmem>>) attributes {dimension_semantics = [#tpu.dimension_semantics<parallel>, #tpu.dimension_semantics<arbitrary>], iteration_bounds = array<i64: 3, 3>, scalar_prefetch = 1 : i64, scratch_operands = 1 : i64, tpu.core_type = #tpu.core_type<tc>, window_params = [{transform_indices = @transform_0, window_bounds = array<i64: 128, 128>}, {transform_indices = @transform_1, window_bounds = array<i64: 128, 128>}, {transform_indices = @transform_2, window_bounds = array<i64: 128, 128>}, {pipeline_mode = #tpu.pipeline_mode<synchronous>, transform_indices = @transform_3, window_bounds = array<i64: 256, 256>}, {pipeline_mode = #tpu.pipeline_mode<synchronous>, transform_indices = @transform_4, window_bounds = array<i64: 1, 256>}, {transform_indices = @transform_5, window_bounds = array<i64: 128, 256>}]} {
    %c0_i32 = arith.constant 0 : i32
    %0 = arith.cmpi eq, %arg1, %c0_i32 : i32
    %1 = arith.extui %0 : i1 to i32
    %c0_i32_0 = arith.constant 0 : i32
    %2 = arith.cmpi ne, %1, %c0_i32_0 : i32
    scf.if %2 {
      %cst = arith.constant 0.000000e+00 : f32
      %12 = vector.broadcast %cst : f32 to vector<128x256xf32>
      %c0 = arith.constant 0 : index
      %c0_4 = arith.constant 0 : index
      %13 = vector.load %arg9[%c0, %c0_4] : memref<128x256xf32, #tpu.memory_space<vmem>>, vector<128x256xf32>
      tpu.vector_store %arg9[%c0, %c0_4], %12 {strides = array<i32>} : memref<128x256xf32, #tpu.memory_space<vmem>>, vector<128x256xf32>,
    } else {
    }
    %3 = arith.index_cast %arg0 : i32 to index
    %4 = arith.index_cast %arg1 : i32 to index
    %5 = memref.load %arg2[%3, %4] : memref<3x3xi32, #tpu.memory_space<smem>>
    %c0_i32_1 = arith.constant 0 : i32
    %6 = arith.cmpi ne, %5, %c0_i32_1 : i32
    %7 = arith.extui %6 : i1 to i32
    %c0_i32_2 = arith.constant 0 : i32
    %8 = arith.cmpi ne, %7, %c0_i32_2 : i32
    scf.if %8 {
      %c0 = arith.constant 0 : index
      %c0_4 = arith.constant 0 : index
      %12 = vector.load %arg3[%c0, %c0_4] : memref<128x128xf32, #tpu.memory_space<vmem>>, vector<128x128xf32>
      %c0_5 = arith.constant 0 : index
      %c0_6 = arith.constant 0 : index
      %13 = vector.load %arg4[%c0_5, %c0_6] : memref<128x128xf32, #tpu.memory_space<vmem>>, vector<128x128xf32>
      %cst = arith.constant dense<0.000000e+00> : vector<128x128xf32>
      %14 = tpu.matmul %12, %13, %cst {dimension_numbers = #tpu.dot_dimension_numbers<[1], [0], [0], [1], [0, 0, 1, 1], [], []>} : vector<128x128xf32>, vector<128x128xf32>, vector<128x128xf32> -> vector<128x128xf32>
      %c0_7 = arith.constant 0 : index
      %c0_8 = arith.constant 0 : index
      %15 = vector.load %arg9[%c0_7, %c0_8] : memref<128x256xf32, #tpu.memory_space<vmem>>, vector<128x128xf32>
      %16 = arith.addf %15, %14 : vector<128x128xf32>
      %c0_9 = arith.constant 0 : index
      %c0_10 = arith.constant 0 : index
      %17 = vector.load %arg9[%c0_9, %c0_10] : memref<128x256xf32, #tpu.memory_space<vmem>>, vector<128x128xf32>
      tpu.vector_store %arg9[%c0_9, %c0_10], %16 {strides = array<i32>} : memref<128x256xf32, #tpu.memory_space<vmem>>, vector<128x128xf32>,
    } else {
    }
    %c2_i32 = arith.constant 2 : i32
    %9 = arith.cmpi eq, %arg1, %c2_i32 : i32
    %10 = arith.extui %9 : i1 to i32
    %c0_i32_3 = arith.constant 0 : i32
    %11 = arith.cmpi ne, %10, %c0_i32_3 : i32
    scf.if %11 {
      %c0 = arith.constant 0 : index
      %c0_4 = arith.constant 0 : index
      %12 = vector.load %arg5[%c0, %c0_4] : memref<128x128xf32, #tpu.memory_space<vmem>>, vector<128x128xf32>
      %c0_5 = arith.constant 0 : index
      %c128 = arith.constant 128 : index
      %13 = vector.load %arg9[%c0_5, %c128] : memref<128x256xf32, #tpu.memory_space<vmem>>, vector<128x128xf32>
      tpu.vector_store %arg9[%c0_5, %c128], %12 {strides = array<i32>} : memref<128x256xf32, #tpu.memory_space<vmem>>, vector<128x128xf32>,
      %c0_6 = arith.constant 0 : index
      %c0_7 = arith.constant 0 : index
      %14 = vector.load %arg9[%c0_6, %c0_7] : memref<128x256xf32, #tpu.memory_space<vmem>>, vector<128x256xf32>
      %c0_8 = arith.constant 0 : index
      %c0_9 = arith.constant 0 : index
      %15 = vector.load %arg6[%c0_8, %c0_9] : memref<256x256xf32, #tpu.memory_space<vmem>>, vector<256x256xf32>
      %cst = arith.constant dense<0.000000e+00> : vector<128x256xf32>
      %16 = tpu.matmul %14, %15, %cst {dimension_numbers = #tpu.dot_dimension_numbers<[1], [0], [0], [1], [0, 0, 1, 1], [], []>} : vector<128x256xf32>, vector<256x256xf32>, vector<128x256xf32> -> vector<128x256xf32>
      %c0_10 = arith.constant 0 : index
      %c0_11 = arith.constant 0 : index
      %17 = vector.load %arg7[%c0_10, %c0_11] : memref<1x256xf32, #tpu.memory_space<vmem>>, vector<1x256xf32>
      %18 = vector.broadcast %17 : vector<1x256xf32> to vector<128x256xf32>
      %19 = arith.addf %16, %18 : vector<128x256xf32>
      %cst_12 = arith.constant 0.000000e+00 : f32
      %20 = vector.broadcast %cst_12 : f32 to vector<128x256xf32>
      %21 = arith.maximumf %19, %20 : vector<128x256xf32>
      %c0_13 = arith.constant 0 : index
      %c0_14 = arith.constant 0 : index
      %22 = vector.load %arg8[%c0_13, %c0_14] : memref<128x256xf32, #tpu.memory_space<vmem>>, vector<128x256xf32>
      tpu.vector_store %arg8[%c0_13, %c0_14], %21 {strides = array<i32>} : memref<128x256xf32, #tpu.memory_space<vmem>>, vector<128x256xf32>,
    } else {
    }
    return
  }
  func.func @transform_0(%arg0: i32, %arg1: i32, %arg2: memref<3x3xi32, #tpu.memory_space<smem>>) -> (i32, i32) {
    %c0_i32 = arith.constant 0 : i32
    return %arg0, %arg1 : i32, i32
  }
  func.func @transform_1(%arg0: i32, %arg1: i32, %arg2: memref<3x3xi32, #tpu.memory_space<smem>>) -> (i32, i32) {
    %c0_i32 = arith.constant 0 : i32
    %c0_i32_0 = arith.constant 0 : i32
    return %arg1, %c0_i32 : i32, i32
  }
  func.func @transform_2(%arg0: i32, %arg1: i32, %arg2: memref<3x3xi32, #tpu.memory_space<smem>>) -> (i32, i32) {
    %c0_i32 = arith.constant 0 : i32
    %c0_i32_0 = arith.constant 0 : i32
    return %arg0, %c0_i32 : i32, i32
  }
  func.func @transform_3(%arg0: i32, %arg1: i32, %arg2: memref<3x3xi32, #tpu.memory_space<smem>>) -> (i32, i32) {
    %c0_i32 = arith.constant 0 : i32
    %c0_i32_0 = arith.constant 0 : i32
    %c0_i32_1 = arith.constant 0 : i32
    return %c0_i32, %c0_i32_0 : i32, i32
  }
  func.func @transform_4(%arg0: i32, %arg1: i32, %arg2: memref<3x3xi32, #tpu.memory_space<smem>>) -> (i32, i32) {
    %c0_i32 = arith.constant 0 : i32
    %c0_i32_0 = arith.constant 0 : i32
    %c0_i32_1 = arith.constant 0 : i32
    return %c0_i32, %c0_i32_0 : i32, i32
  }
  func.func @transform_5(%arg0: i32, %arg1: i32, %arg2: memref<3x3xi32, #tpu.memory_space<smem>>) -> (i32, i32) {
    %c0_i32 = arith.constant 0 : i32
    %c0_i32_0 = arith.constant 0 : i32
    return %arg0, %c0_i32 : i32, i32
  }
}

</mosaic_0001>

<llo_original>
// kernel: tpu_custom_call.1
$region0: #{tpu_custom_call.1}
  #allocation0 [shape = 'u32[]', space=smem, size = 0x4, offset = 0x4, fixed_abs, tag = 'smem constant byte address 0x4 - core index']
  #allocation1 [shape = 'u32[72,128]{1,0:T(1,128)}', space=vmem, size = 0x9000, scoped, tag = 'internal scratch']
  #allocation2 [shape = 'f32[128,256]{1,0:T(8,128)}', space=vmem, size = 0x20000, scoped, tag = 'scratch operand']
  #allocation3 [shape = 's32[1]{0}', space=sflag, size = 0x4, scoped, tag = 'scoped memory for tpu_custom_call.1']
  #allocation4 [shape = 'u8[2048]{0}', space=smem, size = 0x800, scoped, tag = 'prefetched SMEM operand 0']
  %s0 = inlined_call_operand.hbm [shape: s32[3,3], index: 0, kind: input, shape index: {}]
  %s1 = inlined_call_operand.hbm [shape: f32[384,384], index: 1, kind: input, shape index: {}]
  %s2 = inlined_call_operand.hbm [shape: f32[384,128], index: 2, kind: input, shape index: {}]
  %s3 = inlined_call_operand.hbm [shape: f32[384,128], index: 3, kind: input, shape index: {}]
  %s4 = inlined_call_operand.hbm [shape: f32[256,256], index: 4, kind: input, shape index: {}]
  %s5 = inlined_call_operand.vmem [shape: f32[1,256], index: 5, kind: input, shape index: {}]
  %s6 = inlined_call_operand.hbm [shape: f32[384,256], index: 6, kind: output, shape index: {}]
  %s7 = sld [smem:[#allocation0]]
  $region81: #{tpu_custom_call.1} parent=0
    _
  %s9 = ssub.s32 1, %s7
  %s10 = scalar_select 0, %s9, %s7
  %s12 = sshll.u32 %s0, 4
  %s13 = int_to_ptr.hbm [resolvable:$true] %s12
  %15 = dma.hbm_to_smem %s13, 64, [#allocation4], [#allocation3]
  %17 = dma.done [#allocation3], 64
  %18 = sfence
  $region1: #{tpu_custom_call.1} parent=0
    #allocation5 [shape = 'u8[131072]{0}', space=vmem, size = 0x20000, scoped, tag = 'input window, operand 1']
    #allocation6 [shape = 's32[2]{0}', space=sflag, size = 0x8, scoped, tag = 'scoped memory for tpu_custom_call.1']
    #allocation7 [shape = 's32[2]{0}', space=sflag, size = 0x8, scoped, tag = 'scoped memory for tpu_custom_call.1']
    #allocation8 [shape = 'u8[131072]{0}', space=vmem, size = 0x20000, scoped, tag = 'input window, operand 2']
    #allocation9 [shape = 's32[2]{0}', space=sflag, size = 0x8, scoped, tag = 'scoped memory for tpu_custom_call.1']
    #allocation10 [shape = 'u8[131072]{0}', space=vmem, size = 0x20000, scoped, tag = 'input window, operand 3']
    #allocation11 [shape = 'u8[262144]{0}', space=vmem, size = 0x40000, scoped, tag = 'input window, operand 4, single buffered']
    #allocation12 [shape = 's32[1]{0}', space=sflag, size = 0x4, scoped, tag = 'scoped memory for tpu_custom_call.1']
    #allocation13 [shape = 'u8[262144]{0}', space=vmem, size = 0x40000, scoped, tag = 'output window, operand 0']
    %19 = vsyncpa [#allocation6], 0
    %s20 = scalar_lea.sflag [#allocation6], 1
    %21 = vsyncpa %s20, 0
    %22 = vsyncpa [#allocation9], 0
    %s23 = scalar_lea.sflag [#allocation9], 1
    %24 = vsyncpa %s23, 0
    %25 = vsyncpa [#allocation12], 0
    %26 = vsyncpa [#allocation7], 0
    %s27 = scalar_lea.sflag [#allocation7], 1
    %28 = vsyncpa %s27, 0
    loop: start=0, step=1, limit=11
    $region2: #{tpu_custom_call.1} parent=1 // loop_pre_header
      _
    $region3: #{tpu_custom_call.1} parent=1 // loop_header
      %s30 = sphi 0, %s34
      %p31 = scmp.ge.s32.totalorder %s30, 11
      %s37 = sphi 0, %s49
      %s38 = sphi 0, %s45
      %s39 = sphi 0, %s37
      %s40 = sphi 0, %s38
      %s41 = sphi 0, %s39
      %s42 = sphi 0, %s40
      %s54 = sphi 0, %s56
      %s57 = sphi 0, %s54
      %s58 = sphi 0, %s57
      %s74 = sphi 0, %s58
      %s80 = sphi 0, %s82
      %s83 = sphi 0, %s80
      %s84 = sphi 0, %s83
      %s100 = sphi 0, %s84
      %s106 = sphi 0, %s108
      %s109 = sphi 0, %s106
      %s110 = sphi 0, %s109
      %s126 = sphi 0, %s110
      %s130 = sphi 0, %s130
      %s132 = sphi 0, %s130
      %s133 = sphi 0, %s132
      %s147 = sphi 0, %s133
      %s151 = sphi 0, %s151
      %s153 = sphi 0, %s151
      %s154 = sphi 0, %s153
      %s168 = sphi 0, %s154
      %s174 = sphi 0, %s176
      %s177 = sphi 0, %s174
      %s178 = sphi 0, %s177
      %s194 = sphi 0, %s178
    $region4: #{tpu_custom_call.1} parent=1 // loop_header_branch
      %33 = sbr.rel (%p31) target = $region8
    $region5: #{tpu_custom_call.1} parent=1 // loop_body
      %s35 = ssub.s32 %s30, 1
      %s36 = ssub.s32 %s30, 2
      %s43 = sadd.s32 1, %s38
      %p44 = scmp.ge.s32.totalorder %s43, 3
      %s45 = scalar_select %p44, 0, %s43
      %s46 = sadd.s32 1, %s37
      %s47 = scalar_select %p44, %s46, %s37
      %p48 = scmp.ge.s32.totalorder %s47, 3
      %s49 = scalar_select %p48, 0, %s47
      %s50 = ssub.s32 %s37, %s49
      %s51 = ssub.s32 %s38, %s45
      %s52 = sor.u32 %s50, %s51
      %p53 = scmp.eq.s32.totalorder %s52, 0
      %s55 = sadd.s32 %s54, 1
      %s56 = scalar_select %p53, %s54, %s55
      %p59 = pneg %p53
      %p60 = scmp.eq.s32.totalorder %s30, 8
      %p61 = por %p59, %p60
      %p62 = scmp.ne.s32.totalorder %s54, %s57
      %p63 = scmp.eq.s32.totalorder %s30, 0
      %p64 = por %p62, %p63
      %p65 = scmp.ne.s32.totalorder %s54, %s57
      %p66 = scmp.eq.s32.totalorder %s35, 8
      %p67 = por %p65, %p66
      %p68 = scmp.ne.s32.totalorder %s57, %s58
      %p69 = scmp.eq.s32.totalorder %s35, 0
      %p70 = por %p68, %p69
      %p71 = scmp.ne.s32.totalorder %s57, %s58
      %p72 = scmp.eq.s32.totalorder %s36, 8
      %p73 = por %p71, %p72
      %p75 = scmp.ne.s32.totalorder %s58, %s74
      %p76 = scmp.eq.s32.totalorder %s36, 0
      %p77 = por %p75, %p76
      %s78 = ssub.s32 %s38, %s45
      %p79 = scmp.eq.s32.totalorder %s78, 0
      %s81 = sadd.s32 %s80, 1
      %s82 = scalar_select %p79, %s80, %s81
      %p85 = pneg %p79
      %p86 = scmp.eq.s32.totalorder %s30, 8
      %p87 = por %p85, %p86
      %p88 = scmp.ne.s32.totalorder %s80, %s83
      %p89 = scmp.eq.s32.totalorder %s30, 0
      %p90 = por %p88, %p89
      %p91 = scmp.ne.s32.totalorder %s80, %s83
      %p92 = scmp.eq.s32.totalorder %s35, 8
      %p93 = por %p91, %p92
      %p94 = scmp.ne.s32.totalorder %s83, %s84
      %p95 = scmp.eq.s32.totalorder %s35, 0
      %p96 = por %p94, %p95
      %p97 = scmp.ne.s32.totalorder %s83, %s84
      %p98 = scmp.eq.s32.totalorder %s36, 8
      %p99 = por %p97, %p98
      %p101 = scmp.ne.s32.totalorder %s84, %s100
      %p102 = scmp.eq.s32.totalorder %s36, 0
      %p103 = por %p101, %p102
      %s104 = ssub.s32 %s37, %s49
      %p105 = scmp.eq.s32.totalorder %s104, 0
      %s107 = sadd.s32 %s106, 1
      %s108 = scalar_select %p105, %s106, %s107
      %p111 = pneg %p105
      %p112 = scmp.eq.s32.totalorder %s30, 8
      %p113 = por %p111, %p112
      %p114 = scmp.ne.s32.totalorder %s106, %s109
      %p115 = scmp.eq.s32.totalorder %s30, 0
      %p116 = por %p114, %p115
      %p117 = scmp.ne.s32.totalorder %s106, %s109
      %p118 = scmp.eq.s32.totalorder %s35, 8
      %p119 = por %p117, %p118
      %p120 = scmp.ne.s32.totalorder %s109, %s110
      %p121 = scmp.eq.s32.totalorder %s35, 0
      %p122 = por %p120, %p121
      %p123 = scmp.ne.s32.totalorder %s109, %s110
      %p124 = scmp.eq.s32.totalorder %s36, 8
      %p125 = por %p123, %p124
      %p127 = scmp.ne.s32.totalorder %s110, %s126
      %p128 = scmp.eq.s32.totalorder %s36, 0
      %p129 = por %p127, %p128
      %s131 = sadd.s32 %s130, 1
      %p134 = scmp.eq.s32.totalorder %s30, 8
      %p135 = scmp.ne.s32.totalorder %s130, %s132
      %p136 = scmp.eq.s32.totalorder %s30, 0
      %p137 = por %p135, %p136
      %p138 = scmp.ne.s32.totalorder %s130, %s132
      %p139 = scmp.eq.s32.totalorder %s35, 8
      %p140 = por %p138, %p139
      %p141 = scmp.ne.s32.totalorder %s132, %s133
      %p142 = scmp.eq.s32.totalorder %s35, 0
      %p143 = por %p141, %p142
      %p144 = scmp.ne.s32.totalorder %s132, %s133
      %p145 = scmp.eq.s32.totalorder %s36, 8
      %p146 = por %p144, %p145
      %p148 = scmp.ne.s32.totalorder %s133, %s147
      %p149 = scmp.eq.s32.totalorder %s36, 0
      %p150 = por %p148, %p149
      %s152 = sadd.s32 %s151, 1
      %p155 = scmp.eq.s32.totalorder %s30, 8
      %p156 = scmp.ne.s32.totalorder %s151, %s153
      %p157 = scmp.eq.s32.totalorder %s30, 0
      %p158 = por %p156, %p157
      %p159 = scmp.ne.s32.totalorder %s151, %s153
      %p160 = scmp.eq.s32.totalorder %s35, 8
      %p161 = por %p159, %p160
      %p162 = scmp.ne.s32.totalorder %s153, %s154
      %p163 = scmp.eq.s32.totalorder %s35, 0
      %p164 = por %p162, %p163
      %p165 = scmp.ne.s32.totalorder %s153, %s154
      %p166 = scmp.eq.s32.totalorder %s36, 8
      %p167 = por %p165, %p166
      %p169 = scmp.ne.s32.totalorder %s154, %s168
      %p170 = scmp.eq.s32.totalorder %s36, 0
      %p171 = por %p169, %p170
      %s172 = ssub.s32 %s37, %s49
      %p173 = scmp.eq.s32.totalorder %s172, 0
      %s175 = sadd.s32 %s174, 1
      %s176 = scalar_select %p173, %s174, %s175
      %p179 = pneg %p173
      %p180 = scmp.eq.s32.totalorder %s30, 8
      %p181 = por %p179, %p180
      %p182 = scmp.ne.s32.totalorder %s174, %s177
      %p183 = scmp.eq.s32.totalorder %s30, 0
      %p184 = por %p182, %p183
      %p185 = scmp.ne.s32.totalorder %s174, %s177
      %p186 = scmp.eq.s32.totalorder %s35, 8
      %p187 = por %p185, %p186
      %p188 = scmp.ne.s32.totalorder %s177, %s178
      %p189 = scmp.eq.s32.totalorder %s35, 0
      %p190 = por %p188, %p189
      %p191 = scmp.ne.s32.totalorder %s177, %s178
      %p192 = scmp.eq.s32.totalorder %s36, 8
      %p193 = por %p191, %p192
      %p195 = scmp.ne.s32.totalorder %s178, %s194
      %p196 = scmp.eq.s32.totalorder %s36, 0
      %p197 = por %p195, %p196
      %p198 = scmp.le.s32.totalorder 1, %s30
      %p199 = scmp.lt.s32.totalorder %s30, 10
      %p200 = pnand %p198, %p199
      %p201 = pneg %p200
      // Predicated region
      $region9: #{tpu_custom_call.1} parent=5 // pred_check
        _
      $region10: #{tpu_custom_call.1} parent=5 // pred_check_branch
        %203 = sbr.rel (%p200) target = $region12
      $region11: #{tpu_custom_call.1} parent=5 // pred_region
        %s204 = ssub.s32 %s30, 1
        // Predicated region
        $region13: #{tpu_custom_call.1} parent=11 // pred_check
          %p205 = pneg %p143
        $region14: #{tpu_custom_call.1} parent=11 // pred_check_branch
          %207 = sbr.rel (%p205) target = $region16
        $region15: #{tpu_custom_call.1} parent=11 // pred_region
          %209 = vsyncadd [#allocation12], 0
          %s210 = sshll.u32 %s4, 4
          %s211 = int_to_ptr.hbm [resolvable:$true] %s210
          %s212 = sshll.u32 [#allocation11], 4
          %s213 = int_to_ptr.vmem [resolvable:$true] %s212
          %218 = dma.hbm_to_vmem [thread:$0]  %s211, 8192, %s213, [#allocation12], 256, 256, 16
        $region16: #{tpu_custom_call.1} parent=11 // pred_fallthru
          _
        // Predicated region
        $region17: #{tpu_custom_call.1} parent=11 // pred_check
          %p219 = pneg %p164
        $region18: #{tpu_custom_call.1} parent=11 // pred_check_branch
          %221 = sbr.rel (%p219) target = $region20
        $region19: #{tpu_custom_call.1} parent=11 // pred_region
          _
        $region20: #{tpu_custom_call.1} parent=11 // pred_fallthru
          _
      $region12: #{tpu_custom_call.1} parent=5 // pred_fallthru
        _
      %p222 = scmp.lt.s32.totalorder %s30, 9
      // Predicated region
      $region21: #{tpu_custom_call.1} parent=5 // pred_check
        %p223 = pneg %p222
      $region22: #{tpu_custom_call.1} parent=5 // pred_check_branch
        %225 = sbr.rel (%p223) target = $region24
      $region23: #{tpu_custom_call.1} parent=5 // pred_region
        // Predicated region
        $region25: #{tpu_custom_call.1} parent=23 // pred_check
          %p226 = pneg %p64
        $region26: #{tpu_custom_call.1} parent=23 // pred_check_branch
          %228 = sbr.rel (%p226) target = $region28
        $region27: #{tpu_custom_call.1} parent=23 // pred_region
          %s229 = sand.u32 %s54, 1
          %s230 = scalar_lea.sflag [#allocation6], %s229
          %s231 = sand.u32 %s54, 1
          %s232 = smul.addr %s231, 128
          %s233 = scalar_lea.vmem [#allocation5], %s232
          %s234 = smul.u32 16, %s37
          %236 = vsyncadd %s230, 0
          %s237 = smul.addr %s234, 3
          %s238 = sadd.s32 %s38, %s237
          %s239 = smul.addr %s238, 8
          %s240 = scalar_lea.hbm %s1, %s239
          %s241 = sshll.u32 %s240, 4
          %s242 = int_to_ptr.hbm [resolvable:$true] %s241
          %s243 = sshll.u32 %s233, 4
          %s244 = int_to_ptr.vmem [resolvable:$true] %s243
          %249 = dma.hbm_to_vmem [thread:$0]  %s242, 2048, %s244, %s230, 384, 128, 8
        $region28: #{tpu_custom_call.1} parent=23 // pred_fallthru
          _
        // Predicated region
        $region29: #{tpu_custom_call.1} parent=23 // pred_check
          %p250 = pneg %p90
        $region30: #{tpu_custom_call.1} parent=23 // pred_check_branch
          %252 = sbr.rel (%p250) target = $region32
        $region31: #{tpu_custom_call.1} parent=23 // pred_region
          %s253 = sand.u32 %s30, 1
          %s254 = scalar_lea.sflag [#allocation9], %s253
          %s255 = sand.u32 %s80, 1
          %s256 = smul.addr %s255, 128
          %s257 = scalar_lea.vmem [#allocation8], %s256
          %s258 = smul.u32 16, %s38
          %260 = vsyncadd %s254, 0
          %s261 = smul.addr %s258, 8
          %s262 = scalar_lea.hbm %s2, %s261
          %s263 = sshll.u32 %s262, 4
          %s264 = int_to_ptr.hbm [resolvable:$true] %s263
          %s265 = sshll.u32 %s257, 4
          %s266 = int_to_ptr.vmem [resolvable:$true] %s265
          %271 = dma.hbm_to_vmem [thread:$0]  %s264, 2048, %s266, %s254, 128, 128, 8
        $region32: #{tpu_custom_call.1} parent=23 // pred_fallthru
          _
        // Predicated region
        $region33: #{tpu_custom_call.1} parent=23 // pred_check
          %p272 = pneg %p116
        $region34: #{tpu_custom_call.1} parent=23 // pred_check_branch
          %274 = sbr.rel (%p272) target = $region36
        $region35: #{tpu_custom_call.1} parent=23 // pred_region
          %s275 = sand.u32 %s30, 1
          %s276 = scalar_lea.sflag [#allocation9], %s275
          %s277 = sand.u32 %s106, 1
          %s278 = smul.addr %s277, 128
          %s279 = scalar_lea.vmem [#allocation10], %s278
          %s280 = smul.u32 16, %s37
          %282 = vsyncadd %s276, 0
          %s283 = smul.addr %s280, 8
          %s284 = scalar_lea.hbm %s3, %s283
          %s285 = sshll.u32 %s284, 4
          %s286 = int_to_ptr.hbm [resolvable:$true] %s285
          %s287 = sshll.u32 %s279, 4
          %s288 = int_to_ptr.vmem [resolvable:$true] %s287
          %293 = dma.hbm_to_vmem [thread:$0]  %s286, 2048, %s288, %s276, 128, 128, 8
        $region36: #{tpu_custom_call.1} parent=23 // pred_fallthru
          _
      $region24: #{tpu_custom_call.1} parent=5 // pred_fallthru
        _
      %p294 = scmp.le.s32.totalorder 1, %s30
      %p295 = scmp.lt.s32.totalorder %s30, 10
      %p296 = pnand %p294, %p295
      %p297 = pneg %p296
      // Predicated region
      $region37: #{tpu_custom_call.1} parent=5 // pred_check
        _
      $region38: #{tpu_custom_call.1} parent=5 // pred_check_branch
        %299 = sbr.rel (%p296) target = $region40
      $region39: #{tpu_custom_call.1} parent=5 // pred_region
        %s300 = ssub.s32 %s30, 1
        %s301 = sand.u32 %s57, 1
        %s302 = scalar_lea.sflag [#allocation6], %s301
        %s303 = sand.u32 %s57, 1
        %s304 = smul.addr %s303, 128
        %s305 = scalar_lea.vmem [#allocation5], %s304
        // Predicated region
        $region41: #{tpu_custom_call.1} parent=39 // pred_check
          %p306 = pneg %p70
        $region42: #{tpu_custom_call.1} parent=39 // pred_check_branch
          %308 = sbr.rel (%p306) target = $region44
        $region43: #{tpu_custom_call.1} parent=39 // pred_region
          %310 = dma.done %s302, 2048
        $region44: #{tpu_custom_call.1} parent=39 // pred_fallthru
          _
        %s311 = sand.u32 %s35, 1
        %s312 = scalar_lea.sflag [#allocation9], %s311
        %s313 = sand.u32 %s83, 1
        %s314 = smul.addr %s313, 128
        %s315 = scalar_lea.vmem [#allocation8], %s314
        // Predicated region
        $region45: #{tpu_custom_call.1} parent=39 // pred_check
          %p316 = pneg %p96
        $region46: #{tpu_custom_call.1} parent=39 // pred_check_branch
          %318 = sbr.rel (%p316) target = $region48
        $region47: #{tpu_custom_call.1} parent=39 // pred_region
          %320 = dma.done %s312, 2048
        $region48: #{tpu_custom_call.1} parent=39 // pred_fallthru
          _
        %s321 = sand.u32 %s35, 1
        %s322 = scalar_lea.sflag [#allocation9], %s321
        %s323 = sand.u32 %s109, 1
        %s324 = smul.addr %s323, 128
        %s325 = scalar_lea.vmem [#allocation10], %s324
        // Predicated region
        $region49: #{tpu_custom_call.1} parent=39 // pred_check
          %p326 = pneg %p122
        $region50: #{tpu_custom_call.1} parent=39 // pred_check_branch
          %328 = sbr.rel (%p326) target = $region52
        $region51: #{tpu_custom_call.1} parent=39 // pred_region
          %330 = dma.done %s322, 2048
        $region52: #{tpu_custom_call.1} parent=39 // pred_fallthru
          _
        // Predicated region
        $region53: #{tpu_custom_call.1} parent=39 // pred_check
          %p331 = pneg %p143
        $region54: #{tpu_custom_call.1} parent=39 // pred_check_branch
          %333 = sbr.rel (%p331) target = $region56
        $region55: #{tpu_custom_call.1} parent=39 // pred_region
          %335 = dma.done [#allocation12], 8192
        $region56: #{tpu_custom_call.1} parent=39 // pred_fallthru
          _
        %s336 = sand.u32 %s57, 1
        %s337 = scalar_lea.sflag [#allocation6], %s336
        %s338 = sand.u32 %s57, 1
        %s339 = smul.addr %s338, 128
        %s340 = scalar_lea.vmem [#allocation5], %s339
        %p341 = pneg %p70
        %p342 = pneg %p67
        %s343 = sand.u32 %s35, 1
        %s344 = scalar_lea.sflag [#allocation9], %s343
        %s345 = sand.u32 %s83, 1
        %s346 = smul.addr %s345, 128
        %s347 = scalar_lea.vmem [#allocation8], %s346
        %p348 = pneg %p96
        %p349 = pneg %p93
        %s350 = sand.u32 %s35, 1
        %s351 = scalar_lea.sflag [#allocation9], %s350
        %s352 = sand.u32 %s109, 1
        %s353 = smul.addr %s352, 128
        %s354 = scalar_lea.vmem [#allocation10], %s353
        %p355 = pneg %p122
        %p356 = pneg %p119
        %p357 = pneg %p143
        %p358 = pneg %p140
        %p359 = pneg %p164
        %p360 = pneg %p161
        %p361 = pneg %p190
        %p362 = pneg %p187
        %s363 = sand.u32 %s177, 1
        %s364 = scalar_lea.sflag [#allocation7], %s363
        %s365 = sand.u32 %s177, 1
        %s366 = smul.addr %s365, 256
        %s367 = scalar_lea.vmem [#allocation13], %s366
        %s368 = smul.u32 16, %s39
        %s369 = smul.u32 16, %s40
        %s370 = smul.u32 16, %s39
        %s371 = smul.u32 16, %s39
        %p372 = scmp.eq.s32.totalorder %s40, 0
        // Predicated region
        $region57: #{tpu_custom_call.1} parent=39 // pred_check
          %p373 = pneg %p372
        $region58: #{tpu_custom_call.1} parent=39 // pred_check_branch
          %375 = sbr.rel (%p373) target = $region60
        $region59: #{tpu_custom_call.1} parent=39 // pred_region
          %376 = vst [vmem:[#allocation2] sm:$0xff] 0.0
          %377 = vst [vmem:[#allocation2 + $0x8] sm:$0xff] 0.0
          %378 = vst [vmem:[#allocation2 + $0x10] sm:$0xff] 0.0
          %379 = vst [vmem:[#allocation2 + $0x18] sm:$0xff] 0.0
          %380 = vst [vmem:[#allocation2 + $0x20] sm:$0xff] 0.0
          %381 = vst [vmem:[#allocation2 + $0x28] sm:$0xff] 0.0
          %382 = vst [vmem:[#allocation2 + $0x30] sm:$0xff] 0.0
          %383 = vst [vmem:[#allocation2 + $0x38] sm:$0xff] 0.0
          %384 = vst [vmem:[#allocation2 + $0x40] sm:$0xff] 0.0
          %385 = vst [vmem:[#allocation2 + $0x48] sm:$0xff] 0.0
          %386 = vst [vmem:[#allocation2 + $0x50] sm:$0xff] 0.0
          %387 = vst [vmem:[#allocation2 + $0x58] sm:$0xff] 0.0
          %388 = vst [vmem:[#allocation2 + $0x60] sm:$0xff] 0.0
          %389 = vst [vmem:[#allocation2 + $0x68] sm:$0xff] 0.0
          %390 = vst [vmem:[#allocation2 + $0x70] sm:$0xff] 0.0
          %391 = vst [vmem:[#allocation2 + $0x78] sm:$0xff] 0.0
          %392 = vst [vmem:[#allocation2 + $0x80] sm:$0xff] 0.0
          %393 = vst [vmem:[#allocation2 + $0x88] sm:$0xff] 0.0
          %394 = vst [vmem:[#allocation2 + $0x90] sm:$0xff] 0.0
          %395 = vst [vmem:[#allocation2 + $0x98] sm:$0xff] 0.0
          %396 = vst [vmem:[#allocation2 + $0xa0] sm:$0xff] 0.0
          %397 = vst [vmem:[#allocation2 + $0xa8] sm:$0xff] 0.0
          %398 = vst [vmem:[#allocation2 + $0xb0] sm:$0xff] 0.0
          %399 = vst [vmem:[#allocation2 + $0xb8] sm:$0xff] 0.0
          %400 = vst [vmem:[#allocation2 + $0xc0] sm:$0xff] 0.0
          %401 = vst [vmem:[#allocation2 + $0xc8] sm:$0xff] 0.0
          %402 = vst [vmem:[#allocation2 + $0xd0] sm:$0xff] 0.0
          %403 = vst [vmem:[#allocation2 + $0xd8] sm:$0xff] 0.0
          %404 = vst [vmem:[#allocation2 + $0xe0] sm:$0xff] 0.0
          %405 = vst [vmem:[#allocation2 + $0xe8] sm:$0xff] 0.0
          %406 = vst [vmem:[#allocation2 + $0xf0] sm:$0xff] 0.0
          %407 = vst [vmem:[#allocation2 + $0xf8] sm:$0xff] 0.0
        $region60: #{tpu_custom_call.1} parent=39 // pred_fallthru
          _
        %s408 = sshra.s32 %s40, 7
        %s409 = sand.u32 %s40, 127
        %s410 = sadd.s32 %s408, %s39
        %s411 = smul.u32 %s410, 128
        %s412 = sshra.s32 %s40, 7
        %s413 = sand.u32 %s40, 127
        %s414 = sadd.s32 %s411, %s413
        %s415 = sld [smem:[#allocation4 + %s414]]
        %p416 = scmp.ne.s32.totalorder %s415, 0
        // Predicated region
        $region61: #{tpu_custom_call.1} parent=39 // pred_check
          %p417 = pneg %p416
        $region62: #{tpu_custom_call.1} parent=39 // pred_check_branch
          %419 = sbr.rel (%p417) target = $region64
        $region63: #{tpu_custom_call.1} parent=39 // pred_region
          %v420 = vld [vmem:[%s305] sm:$0xff]
          %v421 = vld [vmem:[%s305 + $0x8] sm:$0xff]
          %v422 = vld [vmem:[%s305 + $0x10] sm:$0xff]
          %v423 = vld [vmem:[%s305 + $0x18] sm:$0xff]
          %v424 = vld [vmem:[%s305 + $0x20] sm:$0xff]
          %v425 = vld [vmem:[%s305 + $0x28] sm:$0xff]
          %v426 = vld [vmem:[%s305 + $0x30] sm:$0xff]
          %v427 = vld [vmem:[%s305 + $0x38] sm:$0xff]
          %v428 = vld [vmem:[%s305 + $0x40] sm:$0xff]
          %v429 = vld [vmem:[%s305 + $0x48] sm:$0xff]
          %v430 = vld [vmem:[%s305 + $0x50] sm:$0xff]
          %v431 = vld [vmem:[%s305 + $0x58] sm:$0xff]
          %v432 = vld [vmem:[%s305 + $0x60] sm:$0xff]
          %v433 = vld [vmem:[%s305 + $0x68] sm:$0xff]
          %v434 = vld [vmem:[%s305 + $0x70] sm:$0xff]
          %v435 = vld [vmem:[%s305 + $0x78] sm:$0xff]
          %v436 = vld [vmem:[%s315] sm:$0xff]
          %v437 = vld [vmem:[%s315 + $0x8] sm:$0xff]
          %v438 = vld [vmem:[%s315 + $0x10] sm:$0xff]
          %v439 = vld [vmem:[%s315 + $0x18] sm:$0xff]
          %v440 = vld [vmem:[%s315 + $0x20] sm:$0xff]
          %v441 = vld [vmem:[%s315 + $0x28] sm:$0xff]
          %v442 = vld [vmem:[%s315 + $0x30] sm:$0xff]
          %v443 = vld [vmem:[%s315 + $0x38] sm:$0xff]
          %v444 = vld [vmem:[%s315 + $0x40] sm:$0xff]
          %v445 = vld [vmem:[%s315 + $0x48] sm:$0xff]
          %v446 = vld [vmem:[%s315 + $0x50] sm:$0xff]
          %v447 = vld [vmem:[%s315 + $0x58] sm:$0xff]
          %v448 = vld [vmem:[%s315 + $0x60] sm:$0xff]
          %v449 = vld [vmem:[%s315 + $0x68] sm:$0xff]
          %v450 = vld [vmem:[%s315 + $0x70] sm:$0xff]
          %v451 = vld [vmem:[%s315 + $0x78] sm:$0xff]
          %452 = vmatpush.msra.mxu0 %v451
          %453 = vmatpush.msra.mxu0 %v450
          %454 = vmatpush.msra.mxu0 %v449
          %455 = vmatpush.msra.mxu0 %v448
          %456 = vmatpush.msra.mxu0 %v447
          %457 = vmatpush.msra.mxu0 %v446
          %458 = vmatpush.msra.mxu0 %v445
          %459 = vmatpush.msra.mxu0 %v444
          %460 = vmatpush.msra.mxu0 %v443
          %461 = vmatpush.msra.mxu0 %v442
          %462 = vmatpush.msra.mxu0 %v441
          %463 = vmatpush.msra.mxu0 %v440
          %464 = vmatpush.msra.mxu0 %v439
          %465 = vmatpush.msra.mxu0 %v438
          %466 = vmatpush.msra.mxu0 %v437
          %467 = vmatpush.msra.mxu0 %v436
          %468 = vmatmul.f32.gmra.mxu0 %v420
          %v469 = vpop.f32.mrf.mxu0
          %v470 = vadd.f32 0.0, %v469
          %471 = vmatmul.f32.gmra.mxu0 %v421
          %v472 = vpop.f32.mrf.mxu0
          %v473 = vadd.f32 0.0, %v472
          %474 = vmatmul.f32.gmra.mxu0 %v422
          %v475 = vpop.f32.mrf.mxu0
          %v476 = vadd.f32 0.0, %v475
          %477 = vmatmul.f32.gmra.mxu0 %v423
          %v478 = vpop.f32.mrf.mxu0
          %v479 = vadd.f32 0.0, %v478
          %480 = vmatmul.f32.gmra.mxu0 %v424
          %v481 = vpop.f32.mrf.mxu0
          %v482 = vadd.f32 0.0, %v481
          %483 = vmatmul.f32.gmra.mxu0 %v425
          %v484 = vpop.f32.mrf.mxu0
          %v485 = vadd.f32 0.0, %v484
          %486 = vmatmul.f32.gmra.mxu0 %v426
          %v487 = vpop.f32.mrf.mxu0
          %v488 = vadd.f32 0.0, %v487
          %489 = vmatmul.f32.gmra.mxu0 %v427
          %v490 = vpop.f32.mrf.mxu0
          %v491 = vadd.f32 0.0, %v490
          %492 = vmatmul.f32.gmra.mxu0 %v428
          %v493 = vpop.f32.mrf.mxu0
          %v494 = vadd.f32 0.0, %v493
          %495 = vmatmul.f32.gmra.mxu0 %v429
          %v496 = vpop.f32.mrf.mxu0
          %v497 = vadd.f32 0.0, %v496
          %498 = vmatmul.f32.gmra.mxu0 %v430
          %v499 = vpop.f32.mrf.mxu0
          %v500 = vadd.f32 0.0, %v499
          %501 = vmatmul.f32.gmra.mxu0 %v431
          %v502 = vpop.f32.mrf.mxu0
          %v503 = vadd.f32 0.0, %v502
          %504 = vmatmul.f32.gmra.mxu0 %v432
          %v505 = vpop.f32.mrf.mxu0
          %v506 = vadd.f32 0.0, %v505
          %507 = vmatmul.f32.gmra.mxu0 %v433
          %v508 = vpop.f32.mrf.mxu0
          %v509 = vadd.f32 0.0, %v508
          %510 = vmatmul.f32.gmra.mxu0 %v434
          %v511 = vpop.f32.mrf.mxu0
          %v512 = vadd.f32 0.0, %v511
          %513 = vmatmul.f32.gmra.mxu0 %v435
          %v514 = vpop.f32.mrf.mxu0
          %v515 = vadd.f32 0.0, %v514
          %516 = vdwg.mxu0
          %v517 = vld [vmem:[#allocation2] sm:$0xff]
          %v518 = vld [vmem:[#allocation2 + $0x10] sm:$0xff]
          %v519 = vld [vmem:[#allocation2 + $0x20] sm:$0xff]
          %v520 = vld [vmem:[#allocation2 + $0x30] sm:$0xff]
          %v521 = vld [vmem:[#allocation2 + $0x40] sm:$0xff]
          %v522 = vld [vmem:[#allocation2 + $0x50] sm:$0xff]
          %v523 = vld [vmem:[#allocation2 + $0x60] sm:$0xff]
          %v524 = vld [vmem:[#allocation2 + $0x70] sm:$0xff]
          %v525 = vld [vmem:[#allocation2 + $0x80] sm:$0xff]
          %v526 = vld [vmem:[#allocation2 + $0x90] sm:$0xff]
          %v527 = vld [vmem:[#allocation2 + $0xa0] sm:$0xff]
          %v528 = vld [vmem:[#allocation2 + $0xb0] sm:$0xff]
          %v529 = vld [vmem:[#allocation2 + $0xc0] sm:$0xff]
          %v530 = vld [vmem:[#allocation2 + $0xd0] sm:$0xff]
          %v531 = vld [vmem:[#allocation2 + $0xe0] sm:$0xff]
          %v532 = vld [vmem:[#allocation2 + $0xf0] sm:$0xff]
          %v533 = vadd.f32 %v517, %v470
          %v534 = vadd.f32 %v518, %v473
          %v535 = vadd.f32 %v519, %v476
          %v536 = vadd.f32 %v520, %v479
          %v537 = vadd.f32 %v521, %v482
          %v538 = vadd.f32 %v522, %v485
          %v539 = vadd.f32 %v523, %v488
          %v540 = vadd.f32 %v524, %v491
          %v541 = vadd.f32 %v525, %v494
          %v542 = vadd.f32 %v526, %v497
          %v543 = vadd.f32 %v527, %v500
          %v544 = vadd.f32 %v528, %v503
          %v545 = vadd.f32 %v529, %v506
          %v546 = vadd.f32 %v530, %v509
          %v547 = vadd.f32 %v531, %v512
          %v548 = vadd.f32 %v532, %v515
          %549 = vst [vmem:[#allocation2] sm:$0xff] %v533
          %550 = vst [vmem:[#allocation2 + $0x10] sm:$0xff] %v534
          %551 = vst [vmem:[#allocation2 + $0x20] sm:$0xff] %v535
          %552 = vst [vmem:[#allocation2 + $0x30] sm:$0xff] %v536
          %553 = vst [vmem:[#allocation2 + $0x40] sm:$0xff] %v537
          %554 = vst [vmem:[#allocation2 + $0x50] sm:$0xff] %v538
          %555 = vst [vmem:[#allocation2 + $0x60] sm:$0xff] %v539
          %556 = vst [vmem:[#allocation2 + $0x70] sm:$0xff] %v540
          %557 = vst [vmem:[#allocation2 + $0x80] sm:$0xff] %v541
          %558 = vst [vmem:[#allocation2 + $0x90] sm:$0xff] %v542
          %559 = vst [vmem:[#allocation2 + $0xa0] sm:$0xff] %v543
          %560 = vst [vmem:[#allocation2 + $0xb0] sm:$0xff] %v544
          %561 = vst [vmem:[#allocation2 + $0xc0] sm:$0xff] %v545
          %562 = vst [vmem:[#allocation2 + $0xd0] sm:$0xff] %v546
          %563 = vst [vmem:[#allocation2 + $0xe0] sm:$0xff] %v547
          %564 = vst [vmem:[#allocation2 + $0xf0] sm:$0xff] %v548
        $region64: #{tpu_custom_call.1} parent=39 // pred_fallthru
          _
        %p565 = scmp.eq.s32.totalorder %s40, 2
        // Predicated region
        $region65: #{tpu_custom_call.1} parent=39 // pred_check
          %p566 = pneg %p565
        $region66: #{tpu_custom_call.1} parent=39 // pred_check_branch
          %568 = sbr.rel (%p566) target = $region68
        $region67: #{tpu_custom_call.1} parent=39 // pred_region
          %v569 = vld [vmem:[%s325] sm:$0xff]
          %v570 = vld [vmem:[%s325 + $0x8] sm:$0xff]
          %v571 = vld [vmem:[%s325 + $0x10] sm:$0xff]
          %v572 = vld [vmem:[%s325 + $0x18] sm:$0xff]
          %v573 = vld [vmem:[%s325 + $0x20] sm:$0xff]
          %v574 = vld [vmem:[%s325 + $0x28] sm:$0xff]
          %v575 = vld [vmem:[%s325 + $0x30] sm:$0xff]
          %v576 = vld [vmem:[%s325 + $0x38] sm:$0xff]
          %v577 = vld [vmem:[%s325 + $0x40] sm:$0xff]
          %v578 = vld [vmem:[%s325 + $0x48] sm:$0xff]
          %v579 = vld [vmem:[%s325 + $0x50] sm:$0xff]
          %v580 = vld [vmem:[%s325 + $0x58] sm:$0xff]
          %v581 = vld [vmem:[%s325 + $0x60] sm:$0xff]
          %v582 = vld [vmem:[%s325 + $0x68] sm:$0xff]
          %v583 = vld [vmem:[%s325 + $0x70] sm:$0xff]
          %v584 = vld [vmem:[%s325 + $0x78] sm:$0xff]
          %585 = vst [vmem:[#allocation2 + $0x8] sm:$0xff] %v569
          %586 = vst [vmem:[#allocation2 + $0x18] sm:$0xff] %v570
          %587 = vst [vmem:[#allocation2 + $0x28] sm:$0xff] %v571
          %588 = vst [vmem:[#allocation2 + $0x38] sm:$0xff] %v572
          %589 = vst [vmem:[#allocation2 + $0x48] sm:$0xff] %v573
          %590 = vst [vmem:[#allocation2 + $0x58] sm:$0xff] %v574
          %591 = vst [vmem:[#allocation2 + $0x68] sm:$0xff] %v575
          %592 = vst [vmem:[#allocation2 + $0x78] sm:$0xff] %v576
          %593 = vst [vmem:[#allocation2 + $0x88] sm:$0xff] %v577
          %594 = vst [vmem:[#allocation2 + $0x98] sm:$0xff] %v578
          %595 = vst [vmem:[#allocation2 + $0xa8] sm:$0xff] %v579
          %596 = vst [vmem:[#allocation2 + $0xb8] sm:$0xff] %v580
          %597 = vst [vmem:[#allocation2 + $0xc8] sm:$0xff] %v581
          %598 = vst [vmem:[#allocation2 + $0xd8] sm:$0xff] %v582
          %599 = vst [vmem:[#allocation2 + $0xe8] sm:$0xff] %v583
          %600 = vst [vmem:[#allocation2 + $0xf8] sm:$0xff] %v584
          %v601 = vld [vmem:[#allocation2] sm:$0xff]
          %v602 = vld [vmem:[#allocation2 + $0x8] sm:$0xff]
          %v603 = vld [vmem:[#allocation2 + $0x10] sm:$0xff]
          %v604 = vld [vmem:[#allocation2 + $0x18] sm:$0xff]
          %v605 = vld [vmem:[#allocation2 + $0x20] sm:$0xff]
          %v606 = vld [vmem:[#allocation2 + $0x28] sm:$0xff]
          %v607 = vld [vmem:[#allocation2 + $0x30] sm:$0xff]
          %v608 = vld [vmem:[#allocation2 + $0x38] sm:$0xff]
          %v609 = vld [vmem:[#allocation2 + $0x40] sm:$0xff]
          %v610 = vld [vmem:[#allocation2 + $0x48] sm:$0xff]
          %v611 = vld [vmem:[#allocation2 + $0x50] sm:$0xff]
          %v612 = vld [vmem:[#allocation2 + $0x58] sm:$0xff]
          %v613 = vld [vmem:[#allocation2 + $0x60] sm:$0xff]
          %v614 = vld [vmem:[#allocation2 + $0x68] sm:$0xff]
          %v615 = vld [vmem:[#allocation2 + $0x70] sm:$0xff]
          %v616 = vld [vmem:[#allocation2 + $0x78] sm:$0xff]
          %v617 = vld [vmem:[#allocation2 + $0x80] sm:$0xff]
          %v618 = vld [vmem:[#allocation2 + $0x88] sm:$0xff]
          %v619 = vld [vmem:[#allocation2 + $0x90] sm:$0xff]
          %v620 = vld [vmem:[#allocation2 + $0x98] sm:$0xff]
          %v621 = vld [vmem:[#allocation2 + $0xa0] sm:$0xff]
          %v622 = vld [vmem:[#allocation2 + $0xa8] sm:$0xff]
          %v623 = vld [vmem:[#allocation2 + $0xb0] sm:$0xff]
          %v624 = vld [vmem:[#allocation2 + $0xb8] sm:$0xff]
          %v625 = vld [vmem:[#allocation2 + $0xc0] sm:$0xff]
          %v626 = vld [vmem:[#allocation2 + $0xc8] sm:$0xff]
          %v627 = vld [vmem:[#allocation2 + $0xd0] sm:$0xff]
          %v628 = vld [vmem:[#allocation2 + $0xd8] sm:$0xff]
          %v629 = vld [vmem:[#allocation2 + $0xe0] sm:$0xff]
          %v630 = vld [vmem:[#allocation2 + $0xe8] sm:$0xff]
          %v631 = vld [vmem:[#allocation2 + $0xf0] sm:$0xff]
          %v632 = vld [vmem:[#allocation2 + $0xf8] sm:$0xff]
          %v633 = vld [vmem:[#allocation11] sm:$0xff]
          %v634 = vld [vmem:[#allocation11 + $0x8] sm:$0xff]
          %v635 = vld [vmem:[#allocation11 + $0x10] sm:$0xff]
          %v636 = vld [vmem:[#allocation11 + $0x18] sm:$0xff]
          %v637 = vld [vmem:[#allocation11 + $0x20] sm:$0xff]
          %v638 = vld [vmem:[#allocation11 + $0x28] sm:$0xff]
          %v639 = vld [vmem:[#allocation11 + $0x30] sm:$0xff]
          %v640 = vld [vmem:[#allocation11 + $0x38] sm:$0xff]
          %v641 = vld [vmem:[#allocation11 + $0x40] sm:$0xff]
          %v642 = vld [vmem:[#allocation11 + $0x48] sm:$0xff]
          %v643 = vld [vmem:[#allocation11 + $0x50] sm:$0xff]
          %v644 = vld [vmem:[#allocation11 + $0x58] sm:$0xff]
          %v645 = vld [vmem:[#allocation11 + $0x60] sm:$0xff]
          %v646 = vld [vmem:[#allocation11 + $0x68] sm:$0xff]
          %v647 = vld [vmem:[#allocation11 + $0x70] sm:$0xff]
          %v648 = vld [vmem:[#allocation11 + $0x78] sm:$0xff]
          %v649 = vld [vmem:[#allocation11 + $0x80] sm:$0xff]
          %v650 = vld [vmem:[#allocation11 + $0x88] sm:$0xff]
          %v651 = vld [vmem:[#allocation11 + $0x90] sm:$0xff]
          %v652 = vld [vmem:[#allocation11 + $0x98] sm:$0xff]
          %v653 = vld [vmem:[#allocation11 + $0xa0] sm:$0xff]
          %v654 = vld [vmem:[#allocation11 + $0xa8] sm:$0xff]
          %v655 = vld [vmem:[#allocation11 + $0xb0] sm:$0xff]
          %v656 = vld [vmem:[#allocation11 + $0xb8] sm:$0xff]
          %v657 = vld [vmem:[#allocation11 + $0xc0] sm:$0xff]
          %v658 = vld [vmem:[#allocation11 + $0xc8] sm:$0xff]
          %v659 = vld [vmem:[#allocation11 + $0xd0] sm:$0xff]
          %v660 = vld [vmem:[#allocation11 + $0xd8] sm:$0xff]
          %v661 = vld [vmem:[#allocation11 + $0xe0] sm:$0xff]
          %v662 = vld [vmem:[#allocation11 + $0xe8] sm:$0xff]
          %v663 = vld [vmem:[#allocation11 + $0xf0] sm:$0xff]
          %v664 = vld [vmem:[#allocation11 + $0xf8] sm:$0xff]
          %v665 = vld [vmem:[#allocation11 + $0x100] sm:$0xff]
          %v666 = vld [vmem:[#allocation11 + $0x108] sm:$0xff]
          %v667 = vld [vmem:[#allocation11 + $0x110] sm:$0xff]
          %v668 = vld [vmem:[#allocation11 + $0x118] sm:$0xff]
          %v669 = vld [vmem:[#allocation11 + $0x120] sm:$0xff]
          %v670 = vld [vmem:[#allocation11 + $0x128] sm:$0xff]
          %v671 = vld [vmem:[#allocation11 + $0x130] sm:$0xff]
          %v672 = vld [vmem:[#allocation11 + $0x138] sm:$0xff]
          %v673 = vld [vmem:[#allocation11 + $0x140] sm:$0xff]
          %v674 = vld [vmem:[#allocation11 + $0x148] sm:$0xff]
          %v675 = vld [vmem:[#allocation11 + $0x150] sm:$0xff]
          %v676 = vld [vmem:[#allocation11 + $0x158] sm:$0xff]
          %v677 = vld [vmem:[#allocation11 + $0x160] sm:$0xff]
          %v678 = vld [vmem:[#allocation11 + $0x168] sm:$0xff]
          %v679 = vld [vmem:[#allocation11 + $0x170] sm:$0xff]
          %v680 = vld [vmem:[#allocation11 + $0x178] sm:$0xff]
          %v681 = vld [vmem:[#allocation11 + $0x180] sm:$0xff]
          %v682 = vld [vmem:[#allocation11 + $0x188] sm:$0xff]
          %v683 = vld [vmem:[#allocation11 + $0x190] sm:$0xff]
          %v684 = vld [vmem:[#allocation11 + $0x198] sm:$0xff]
          %v685 = vld [vmem:[#allocation11 + $0x1a0] sm:$0xff]
          %v686 = vld [vmem:[#allocation11 + $0x1a8] sm:$0xff]
          %v687 = vld [vmem:[#allocation11 + $0x1b0] sm:$0xff]
          %v688 = vld [vmem:[#allocation11 + $0x1b8] sm:$0xff]
          %v689 = vld [vmem:[#allocation11 + $0x1c0] sm:$0xff]
          %v690 = vld [vmem:[#allocation11 + $0x1c8] sm:$0xff]
          %v691 = vld [vmem:[#allocation11 + $0x1d0] sm:$0xff]
          %v692 = vld [vmem:[#allocation11 + $0x1d8] sm:$0xff]
          %v693 = vld [vmem:[#allocation11 + $0x1e0] sm:$0xff]
          %v694 = vld [vmem:[#allocation11 + $0x1e8] sm:$0xff]
          %v695 = vld [vmem:[#allocation11 + $0x1f0] sm:$0xff]
          %v696 = vld [vmem:[#allocation11 + $0x1f8] sm:$0xff]
          %v697 = vld [vmem:[%s5] sm:$0x3]
          %v699 = vperm.slane %v697, 0
          %v700 = vperm.slane %v697, 1
          %703 = vmatpush.msra.mxu0 %v663
          %704 = vmatpush.msra.mxu0 %v661
          %705 = vmatpush.msra.mxu0 %v659
          %706 = vmatpush.msra.mxu0 %v657
          %707 = vmatpush.msra.mxu0 %v655
          %708 = vmatpush.msra.mxu0 %v653
          %709 = vmatpush.msra.mxu0 %v651
          %710 = vmatpush.msra.mxu0 %v649
          %711 = vmatpush.msra.mxu0 %v647
          %712 = vmatpush.msra.mxu0 %v645
          %713 = vmatpush.msra.mxu0 %v643
          %714 = vmatpush.msra.mxu0 %v641
          %715 = vmatpush.msra.mxu0 %v639
          %716 = vmatpush.msra.mxu0 %v637
          %717 = vmatpush.msra.mxu0 %v635
          %718 = vmatpush.msra.mxu0 %v633
          %719 = vmatmul.f32.gmra.mxu0 %v601
          %v720 = vpop.f32.mrf.mxu0
          %v721 = vadd.f32 %v699, %v720
          %722 = vmatmul.f32.gmra.mxu0 %v603
          %v723 = vpop.f32.mrf.mxu0
          %v724 = vadd.f32 %v699, %v723
          %725 = vmatmul.f32.gmra.mxu0 %v605
          %v726 = vpop.f32.mrf.mxu0
          %v727 = vadd.f32 %v699, %v726
          %728 = vmatmul.f32.gmra.mxu0 %v607
          %v729 = vpop.f32.mrf.mxu0
          %v730 = vadd.f32 %v699, %v729
          %731 = vmatmul.f32.gmra.mxu0 %v609
          %v732 = vpop.f32.mrf.mxu0
          %v733 = vadd.f32 %v699, %v732
          %734 = vmatmul.f32.gmra.mxu0 %v611
          %v735 = vpop.f32.mrf.mxu0
          %v736 = vadd.f32 %v699, %v735
          %737 = vmatmul.f32.gmra.mxu0 %v613
          %v738 = vpop.f32.mrf.mxu0
          %v739 = vadd.f32 %v699, %v738
          %740 = vmatmul.f32.gmra.mxu0 %v615
          %v741 = vpop.f32.mrf.mxu0
          %v742 = vadd.f32 %v699, %v741
          %743 = vmatmul.f32.gmra.mxu0 %v617
          %v744 = vpop.f32.mrf.mxu0
          %v745 = vadd.f32 %v699, %v744
          %746 = vmatmul.f32.gmra.mxu0 %v619
          %v747 = vpop.f32.mrf.mxu0
          %v748 = vadd.f32 %v699, %v747
          %749 = vmatmul.f32.gmra.mxu0 %v621
          %v750 = vpop.f32.mrf.mxu0
          %v751 = vadd.f32 %v699, %v750
          %752 = vmatmul.f32.gmra.mxu0 %v623
          %v753 = vpop.f32.mrf.mxu0
          %v754 = vadd.f32 %v699, %v753
          %755 = vmatmul.f32.gmra.mxu0 %v625
          %v756 = vpop.f32.mrf.mxu0
          %v757 = vadd.f32 %v699, %v756
          %758 = vmatmul.f32.gmra.mxu0 %v627
          %v759 = vpop.f32.mrf.mxu0
          %v760 = vadd.f32 %v699, %v759
          %761 = vmatmul.f32.gmra.mxu0 %v629
          %v762 = vpop.f32.mrf.mxu0
          %v763 = vadd.f32 %v699, %v762
          %764 = vmatmul.f32.gmra.mxu0 %v631
          %v765 = vpop.f32.mrf.mxu0
          %v766 = vadd.f32 %v699, %v765
          %767 = vdwg.mxu0
          %768 = vmatpush.msra.mxu0 %v695
          %769 = vmatpush.msra.mxu0 %v693
          %770 = vmatpush.msra.mxu0 %v691
          %771 = vmatpush.msra.mxu0 %v689
          %772 = vmatpush.msra.mxu0 %v687
          %773 = vmatpush.msra.mxu0 %v685
          %774 = vmatpush.msra.mxu0 %v683
          %775 = vmatpush.msra.mxu0 %v681
          %776 = vmatpush.msra.mxu0 %v679
          %777 = vmatpush.msra.mxu0 %v677
          %778 = vmatpush.msra.mxu0 %v675
          %779 = vmatpush.msra.mxu0 %v673
          %780 = vmatpush.msra.mxu0 %v671
          %781 = vmatpush.msra.mxu0 %v669
          %782 = vmatpush.msra.mxu0 %v667
          %783 = vmatpush.msra.mxu0 %v665
          %784 = vmatmul.f32.gmra.mxu0 %v602
          %v785 = vpop.f32.mrf.mxu0
          %v786 = vadd.f32 %v721, %v785
          %787 = vmatmul.f32.gmra.mxu0 %v604
          %v788 = vpop.f32.mrf.mxu0
          %v789 = vadd.f32 %v724, %v788
          %790 = vmatmul.f32.gmra.mxu0 %v606
          %v791 = vpop.f32.mrf.mxu0
          %v792 = vadd.f32 %v727, %v791
          %793 = vmatmul.f32.gmra.mxu0 %v608
          %v794 = vpop.f32.mrf.mxu0
          %v795 = vadd.f32 %v730, %v794
          %796 = vmatmul.f32.gmra.mxu0 %v610
          %v797 = vpop.f32.mrf.mxu0
          %v798 = vadd.f32 %v733, %v797
          %799 = vmatmul.f32.gmra.mxu0 %v612
          %v800 = vpop.f32.mrf.mxu0
          %v801 = vadd.f32 %v736, %v800
          %802 = vmatmul.f32.gmra.mxu0 %v614
          %v803 = vpop.f32.mrf.mxu0
          %v804 = vadd.f32 %v739, %v803
          %805 = vmatmul.f32.gmra.mxu0 %v616
          %v806 = vpop.f32.mrf.mxu0
          %v807 = vadd.f32 %v742, %v806
          %808 = vmatmul.f32.gmra.mxu0 %v618
          %v809 = vpop.f32.mrf.mxu0
          %v810 = vadd.f32 %v745, %v809
          %811 = vmatmul.f32.gmra.mxu0 %v620
          %v812 = vpop.f32.mrf.mxu0
          %v813 = vadd.f32 %v748, %v812
          %814 = vmatmul.f32.gmra.mxu0 %v622
          %v815 = vpop.f32.mrf.mxu0
          %v816 = vadd.f32 %v751, %v815
          %817 = vmatmul.f32.gmra.mxu0 %v624
          %v818 = vpop.f32.mrf.mxu0
          %v819 = vadd.f32 %v754, %v818
          %820 = vmatmul.f32.gmra.mxu0 %v626
          %v821 = vpop.f32.mrf.mxu0
          %v822 = vadd.f32 %v757, %v821
          %823 = vmatmul.f32.gmra.mxu0 %v628
          %v824 = vpop.f32.mrf.mxu0
          %v825 = vadd.f32 %v760, %v824
          %826 = vmatmul.f32.gmra.mxu0 %v630
          %v827 = vpop.f32.mrf.mxu0
          %v828 = vadd.f32 %v763, %v827
          %829 = vmatmul.f32.gmra.mxu0 %v632
          %v830 = vpop.f32.mrf.mxu0
          %v831 = vadd.f32 %v766, %v830
          %832 = vdwg.mxu0
          %833 = vmatpush.msra.mxu0 %v664
          %834 = vmatpush.msra.mxu0 %v662
          %835 = vmatpush.msra.mxu0 %v660
          %836 = vmatpush.msra.mxu0 %v658
          %837 = vmatpush.msra.mxu0 %v656
          %838 = vmatpush.msra.mxu0 %v654
          %839 = vmatpush.msra.mxu0 %v652
          %840 = vmatpush.msra.mxu0 %v650
          %841 = vmatpush.msra.mxu0 %v648
          %842 = vmatpush.msra.mxu0 %v646
          %843 = vmatpush.msra.mxu0 %v644
          %844 = vmatpush.msra.mxu0 %v642
          %845 = vmatpush.msra.mxu0 %v640
          %846 = vmatpush.msra.mxu0 %v638
          %847 = vmatpush.msra.mxu0 %v636
          %848 = vmatpush.msra.mxu0 %v634
          %849 = vmatmul.f32.gmra.mxu0 %v601
          %v850 = vpop.f32.mrf.mxu0
          %v851 = vadd.f32 %v700, %v850
          %852 = vmatmul.f32.gmra.mxu0 %v603
          %v853 = vpop.f32.mrf.mxu0
          %v854 = vadd.f32 %v700, %v853
          %855 = vmatmul.f32.gmra.mxu0 %v605
          %v856 = vpop.f32.mrf.mxu0
          %v857 = vadd.f32 %v700, %v856
          %858 = vmatmul.f32.gmra.mxu0 %v607
          %v859 = vpop.f32.mrf.mxu0
          %v860 = vadd.f32 %v700, %v859
          %861 = vmatmul.f32.gmra.mxu0 %v609
          %v862 = vpop.f32.mrf.mxu0
          %v863 = vadd.f32 %v700, %v862
          %864 = vmatmul.f32.gmra.mxu0 %v611
          %v865 = vpop.f32.mrf.mxu0
          %v866 = vadd.f32 %v700, %v865
          %867 = vmatmul.f32.gmra.mxu0 %v613
          %v868 = vpop.f32.mrf.mxu0
          %v869 = vadd.f32 %v700, %v868
          %870 = vmatmul.f32.gmra.mxu0 %v615
          %v871 = vpop.f32.mrf.mxu0
          %v872 = vadd.f32 %v700, %v871
          %873 = vmatmul.f32.gmra.mxu0 %v617
          %v874 = vpop.f32.mrf.mxu0
          %v875 = vadd.f32 %v700, %v874
          %876 = vmatmul.f32.gmra.mxu0 %v619
          %v877 = vpop.f32.mrf.mxu0
          %v878 = vadd.f32 %v700, %v877
          %879 = vmatmul.f32.gmra.mxu0 %v621
          %v880 = vpop.f32.mrf.mxu0
          %v881 = vadd.f32 %v700, %v880
          %882 = vmatmul.f32.gmra.mxu0 %v623
          %v883 = vpop.f32.mrf.mxu0
          %v884 = vadd.f32 %v700, %v883
          %885 = vmatmul.f32.gmra.mxu0 %v625
          %v886 = vpop.f32.mrf.mxu0
          %v887 = vadd.f32 %v700, %v886
          %888 = vmatmul.f32.gmra.mxu0 %v627
          %v889 = vpop.f32.mrf.mxu0
          %v890 = vadd.f32 %v700, %v889
          %891 = vmatmul.f32.gmra.mxu0 %v629
          %v892 = vpop.f32.mrf.mxu0
          %v893 = vadd.f32 %v700, %v892
          %894 = vmatmul.f32.gmra.mxu0 %v631
          %v895 = vpop.f32.mrf.mxu0
          %v896 = vadd.f32 %v700, %v895
          %897 = vdwg.mxu0
          %898 = vmatpush.msra.mxu0 %v696
          %899 = vmatpush.msra.mxu0 %v694
          %900 = vmatpush.msra.mxu0 %v692
          %901 = vmatpush.msra.mxu0 %v690
          %902 = vmatpush.msra.mxu0 %v688
          %903 = vmatpush.msra.mxu0 %v686
          %904 = vmatpush.msra.mxu0 %v684
          %905 = vmatpush.msra.mxu0 %v682
          %906 = vmatpush.msra.mxu0 %v680
          %907 = vmatpush.msra.mxu0 %v678
          %908 = vmatpush.msra.mxu0 %v676
          %909 = vmatpush.msra.mxu0 %v674
          %910 = vmatpush.msra.mxu0 %v672
          %911 = vmatpush.msra.mxu0 %v670
          %912 = vmatpush.msra.mxu0 %v668
          %913 = vmatpush.msra.mxu0 %v666
          %914 = vmatmul.f32.gmra.mxu0 %v602
          %v915 = vpop.f32.mrf.mxu0
          %v916 = vadd.f32 %v851, %v915
          %917 = vmatmul.f32.gmra.mxu0 %v604
          %v918 = vpop.f32.mrf.mxu0
          %v919 = vadd.f32 %v854, %v918
          %920 = vmatmul.f32.gmra.mxu0 %v606
          %v921 = vpop.f32.mrf.mxu0
          %v922 = vadd.f32 %v857, %v921
          %923 = vmatmul.f32.gmra.mxu0 %v608
          %v924 = vpop.f32.mrf.mxu0
          %v925 = vadd.f32 %v860, %v924
          %926 = vmatmul.f32.gmra.mxu0 %v610
          %v927 = vpop.f32.mrf.mxu0
          %v928 = vadd.f32 %v863, %v927
          %929 = vmatmul.f32.gmra.mxu0 %v612
          %v930 = vpop.f32.mrf.mxu0
          %v931 = vadd.f32 %v866, %v930
          %932 = vmatmul.f32.gmra.mxu0 %v614
          %v933 = vpop.f32.mrf.mxu0
          %v934 = vadd.f32 %v869, %v933
          %935 = vmatmul.f32.gmra.mxu0 %v616
          %v936 = vpop.f32.mrf.mxu0
          %v937 = vadd.f32 %v872, %v936
          %938 = vmatmul.f32.gmra.mxu0 %v618
          %v939 = vpop.f32.mrf.mxu0
          %v940 = vadd.f32 %v875, %v939
          %941 = vmatmul.f32.gmra.mxu0 %v620
          %v942 = vpop.f32.mrf.mxu0
          %v943 = vadd.f32 %v878, %v942
          %944 = vmatmul.f32.gmra.mxu0 %v622
          %v945 = vpop.f32.mrf.mxu0
          %v946 = vadd.f32 %v881, %v945
          %947 = vmatmul.f32.gmra.mxu0 %v624
          %v948 = vpop.f32.mrf.mxu0
          %v949 = vadd.f32 %v884, %v948
          %950 = vmatmul.f32.gmra.mxu0 %v626
          %v951 = vpop.f32.mrf.mxu0
          %v952 = vadd.f32 %v887, %v951
          %953 = vmatmul.f32.gmra.mxu0 %v628
          %v954 = vpop.f32.mrf.mxu0
          %v955 = vadd.f32 %v890, %v954
          %956 = vmatmul.f32.gmra.mxu0 %v630
          %v957 = vpop.f32.mrf.mxu0
          %v958 = vadd.f32 %v893, %v957
          %959 = vmatmul.f32.gmra.mxu0 %v632
          %v960 = vpop.f32.mrf.mxu0
          %v961 = vadd.f32 %v896, %v960
          %962 = vdwg.mxu0
          %v963 = vmax.f32 %v786, 0.0
          %v964 = vmax.f32 %v916, 0.0
          %v965 = vmax.f32 %v789, 0.0
          %v966 = vmax.f32 %v919, 0.0
          %v967 = vmax.f32 %v792, 0.0
          %v968 = vmax.f32 %v922, 0.0
          %v969 = vmax.f32 %v795, 0.0
          %v970 = vmax.f32 %v925, 0.0
          %v971 = vmax.f32 %v798, 0.0
          %v972 = vmax.f32 %v928, 0.0
          %v973 = vmax.f32 %v801, 0.0
          %v974 = vmax.f32 %v931, 0.0
          %v975 = vmax.f32 %v804, 0.0
          %v976 = vmax.f32 %v934, 0.0
          %v977 = vmax.f32 %v807, 0.0
          %v978 = vmax.f32 %v937, 0.0
          %v979 = vmax.f32 %v810, 0.0
          %v980 = vmax.f32 %v940, 0.0
          %v981 = vmax.f32 %v813, 0.0
          %v982 = vmax.f32 %v943, 0.0
          %v983 = vmax.f32 %v816, 0.0
          %v984 = vmax.f32 %v946, 0.0
          %v985 = vmax.f32 %v819, 0.0
          %v986 = vmax.f32 %v949, 0.0
          %v987 = vmax.f32 %v822, 0.0
          %v988 = vmax.f32 %v952, 0.0
          %v989 = vmax.f32 %v825, 0.0
          %v990 = vmax.f32 %v955, 0.0
          %v991 = vmax.f32 %v828, 0.0
          %v992 = vmax.f32 %v958, 0.0
          %v993 = vmax.f32 %v831, 0.0
          %v994 = vmax.f32 %v961, 0.0
          %995 = vst [vmem:[%s367] sm:$0xff] %v963
          %996 = vst [vmem:[%s367 + $0x8] sm:$0xff] %v964
          %997 = vst [vmem:[%s367 + $0x10] sm:$0xff] %v965
          %998 = vst [vmem:[%s367 + $0x18] sm:$0xff] %v966
          %999 = vst [vmem:[%s367 + $0x20] sm:$0xff] %v967
          %1000 = vst [vmem:[%s367 + $0x28] sm:$0xff] %v968
          %1001 = vst [vmem:[%s367 + $0x30] sm:$0xff] %v969
          %1002 = vst [vmem:[%s367 + $0x38] sm:$0xff] %v970
          %1003 = vst [vmem:[%s367 + $0x40] sm:$0xff] %v971
          %1004 = vst [vmem:[%s367 + $0x48] sm:$0xff] %v972
          %1005 = vst [vmem:[%s367 + $0x50] sm:$0xff] %v973
          %1006 = vst [vmem:[%s367 + $0x58] sm:$0xff] %v974
          %1007 = vst [vmem:[%s367 + $0x60] sm:$0xff] %v975
          %1008 = vst [vmem:[%s367 + $0x68] sm:$0xff] %v976
          %1009 = vst [vmem:[%s367 + $0x70] sm:$0xff] %v977
          %1010 = vst [vmem:[%s367 + $0x78] sm:$0xff] %v978
          %1011 = vst [vmem:[%s367 + $0x80] sm:$0xff] %v979
          %1012 = vst [vmem:[%s367 + $0x88] sm:$0xff] %v980
          %1013 = vst [vmem:[%s367 + $0x90] sm:$0xff] %v981
          %1014 = vst [vmem:[%s367 + $0x98] sm:$0xff] %v982
          %1015 = vst [vmem:[%s367 + $0xa0] sm:$0xff] %v983
          %1016 = vst [vmem:[%s367 + $0xa8] sm:$0xff] %v984
          %1017 = vst [vmem:[%s367 + $0xb0] sm:$0xff] %v985
          %1018 = vst [vmem:[%s367 + $0xb8] sm:$0xff] %v986
          %1019 = vst [vmem:[%s367 + $0xc0] sm:$0xff] %v987
          %1020 = vst [vmem:[%s367 + $0xc8] sm:$0xff] %v988
          %1021 = vst [vmem:[%s367 + $0xd0] sm:$0xff] %v989
          %1022 = vst [vmem:[%s367 + $0xd8] sm:$0xff] %v990
          %1023 = vst [vmem:[%s367 + $0xe0] sm:$0xff] %v991
          %1024 = vst [vmem:[%s367 + $0xe8] sm:$0xff] %v992
          %1025 = vst [vmem:[%s367 + $0xf0] sm:$0xff] %v993
          %1026 = vst [vmem:[%s367 + $0xf8] sm:$0xff] %v994
        $region68: #{tpu_custom_call.1} parent=39 // pred_fallthru
          _
        %s1027 = sand.u32 %s177, 1
        %s1028 = scalar_lea.sflag [#allocation7], %s1027
        %s1029 = sand.u32 %s177, 1
        %s1030 = smul.addr %s1029, 256
        %s1031 = scalar_lea.vmem [#allocation13], %s1030
        // Predicated region
        $region69: #{tpu_custom_call.1} parent=39 // pred_check
          %p1032 = pneg %p187
        $region70: #{tpu_custom_call.1} parent=39 // pred_check_branch
          %1034 = sbr.rel (%p1032) target = $region72
        $region71: #{tpu_custom_call.1} parent=39 // pred_region
          %s1035 = smul.u32 16, %s39
          %1037 = vsyncadd %s1028, 0
          %s1038 = smul.addr %s1035, 2
          %s1039 = smul.addr %s1038, 8
          %s1040 = scalar_lea.hbm %s6, %s1039
          %s1041 = sshll.u32 %s1031, 4
          %s1042 = int_to_ptr.vmem [resolvable:$true] %s1041
          %s1043 = sshll.u32 %s1040, 4
          %s1044 = int_to_ptr.hbm [resolvable:$true] %s1043
          %1049 = dma.vmem_to_hbm [thread:$0]  %s1042, 4096, %s1044, %s1028, 256, 256, 16
        $region72: #{tpu_custom_call.1} parent=39 // pred_fallthru
          _
      $region40: #{tpu_custom_call.1} parent=5 // pred_fallthru
        _
      %p1050 = scmp.le.s32.totalorder 2, %s30
      // Predicated region
      $region73: #{tpu_custom_call.1} parent=5 // pred_check
        %p1051 = pneg %p1050
      $region74: #{tpu_custom_call.1} parent=5 // pred_check_branch
        %1053 = sbr.rel (%p1051) target = $region76
      $region75: #{tpu_custom_call.1} parent=5 // pred_region
        %s1054 = ssub.s32 %s30, 2
        // Predicated region
        $region77: #{tpu_custom_call.1} parent=75 // pred_check
          %p1055 = pneg %p193
        $region78: #{tpu_custom_call.1} parent=75 // pred_check_branch
          %1057 = sbr.rel (%p1055) target = $region80
        $region79: #{tpu_custom_call.1} parent=75 // pred_region
          %s1058 = sand.u32 %s178, 1
          %s1059 = scalar_lea.sflag [#allocation7], %s1058
          %s1060 = sand.u32 %s178, 1
          %s1061 = smul.addr %s1060, 256
          %s1062 = scalar_lea.vmem [#allocation13], %s1061
          %1064 = dma.done %s1059, 4096
        $region80: #{tpu_custom_call.1} parent=75 // pred_fallthru
          _
      $region76: #{tpu_custom_call.1} parent=5 // pred_fallthru
        _
    $region6: #{tpu_custom_call.1} parent=1 // loop_footer
      %s34 = sadd.s32 1, %s30
    $region7: #{tpu_custom_call.1} parent=1 // loop_footer_branch
      %29 = sbr.rel target = $region3
    $region8: #{tpu_custom_call.1} parent=1 // loop_exit
      _
    %1065 = vsyncpa [#allocation6], 1
    %s1066 = scalar_lea.sflag [#allocation6], 1
    %1067 = vsyncpa %s1066, 1
    %1068 = vsyncpa [#allocation9], 1
    %s1069 = scalar_lea.sflag [#allocation9], 1
    %1070 = vsyncpa %s1069, 1
    %1071 = vsyncpa [#allocation12], 1
    %1072 = vsyncpa [#allocation7], 1
    %s1073 = scalar_lea.sflag [#allocation7], 1
    %1074 = vsyncpa %s1073, 1

</llo_original>
